<compile_context>
chip_gen: v6e
topology: v6e:2x2x1
jax: 0.10.0
libtpu: 0.0.40
codegen_flags: <defaults>
</compile_context>

<pallas_src>
import jax
import jax.numpy as jnp
from jax.experimental import pallas as pl
from jax.experimental.pallas import tpu as pltpu


LEAKY_SLOPE = 0.2
BN_EPS = 1e-5
LANE = 128
SUBLANE = 8


def _round_up(n, m):
    return ((n + m - 1) // m) * m


# ---------------------------------------------------------------------------
# Kernel
# ---------------------------------------------------------------------------
def _decoder_kernel(x_ref,
                    w0_ref, b0_ref,
                    w1_ref, b1_ref,
                    w2_ref, b2_ref,
                    o_ref):
    """Fused 3-layer MLP decoder on one batch tile.

    Hidden layer i: h = leaky_relu(x @ Wi' + bi')   (BN already folded in Wi', bi')
    Output layer:   o = sigmoid(h @ W2 + b2)
    Matmuls accumulate in f32 on the MXU; elementwise stays f32 on the VPU;
    the exp of the sigmoid rides the EUP slot.  Output cast only at the store.
    """
    x = x_ref[...]

    h = jnp.dot(x, w0_ref[...], preferred_element_type=jnp.float32) + b0_ref[...]
    h = jnp.maximum(h, LEAKY_SLOPE * h)          # leaky_relu, slope in (0,1)

    h = jnp.dot(h, w1_ref[...], preferred_element_type=jnp.float32) + b1_ref[...]
    h = jnp.maximum(h, LEAKY_SLOPE * h)

    logits = jnp.dot(h, w2_ref[...], preferred_element_type=jnp.float32) + b2_ref[...]

    # Exact, numerically-stable sigmoid: always exponentiate a non-positive arg.
    pos = logits >= 0.0
    z = jnp.exp(jnp.where(pos, -logits, logits))       # exp(-|logits|), no overflow
    sig = jnp.where(pos, 1.0 / (1.0 + z), z / (1.0 + z))
    o_ref[...] = sig.astype(o_ref.dtype)


# ---------------------------------------------------------------------------
# One-time parameter preparation (fold BN, (in,out) layout, pad hidden lanes)
# ---------------------------------------------------------------------------
def prepare_decoder_params(params):
    """Fold eval-mode BatchNorm1d into the Linear weights/biases, zero-pad the
    HIDDEN feature dims to lane-dense multiples of 128 (output stays at its
    true width), and return a static bundle.  Call ONCE; reuse across calls."""

    def fold(w, b, gamma, beta, rmean, rvar):
        scale = gamma / jnp.sqrt(rvar + BN_EPS)        # (out,)
        shift = beta - rmean * scale                   # (out,)
        return w * scale[None, :], b * scale + shift   # W'=(in,out), b'=(out,)

    w0, b0 = fold(params["w0"], params["b0"], params["g0"], params["be0"],
                  params["rm0"], params["rv0"])
    w1, b1 = fold(params["w1"], params["b1"], params["g1"], params["be1"],
                  params["rm1"], params["rv1"])
    w2, b2 = params["w2"], params["b2"]

    latent_dim = w0.shape[0]
    h0, h1 = w0.shape[1], w1.shape[1]
    output_dim = w2.shape[1]
    h0p = _round_up(h0, LANE)
    h1p = _round_up(h1, LANE)

    def pad2(w, rows, cols):
        return jnp.pad(w, ((0, rows - w.shape[0]), (0, cols - w.shape[1])))

    def pad1(b, cols):
        return jnp.pad(b, (0, cols - b.shape[0])).reshape(1, cols)

    # Zero-padded hidden lanes stay exactly 0 through bias(0) -> leaky_relu,
    # and padded weight rows contribute nothing to the next matmul.
    return {
        "latent_dim": latent_dim,
        "output_dim": output_dim,
        "w0": pad2(w0, latent_dim, h0p), "b0": pad1(b0, h0p),
        "w1": pad2(w1, h0p, h1p),        "b1": pad1(b1, h1p),
        "w2": pad2(w2, h1p, output_dim), "b2": pad1(b2, output_dim),
    }


# ---------------------------------------------------------------------------
# Forward
# ---------------------------------------------------------------------------
def probabilistic_decoder_forward(x, prep, *, batch_tile=512,
                                  out_dtype=jnp.float32):
    """x: (batch, latent_dim) f32.  prep: output of prepare_decoder_params.

    out_dtype=jnp.bfloat16 halves the output writeback bandwidth (sigmoid
    outputs in [0,1] tolerate bf16); math stays f32 regardless.
    """
    batch, latent_dim = x.shape
    assert latent_dim == prep["latent_dim"]
    output_dim = prep["output_dim"]

    # Balanced batch tiles: at most `batch_tile` rows per tile, sublane-aligned,
    # with <8 rows of padding per tile.  If the whole batch would fit one tile
    # but is big enough to split, use >=2 tiles so both v7x TensorCores work.
    num_tiles = pl.cdiv(batch, batch_tile)
    if num_tiles == 1 and batch > 2 * SUBLANE:
        num_tiles = 2
    tb = _round_up(pl.cdiv(batch, num_tiles), SUBLANE)
    batch_p = num_tiles * tb
    if batch_p != batch:
        x = jnp.pad(x, ((0, batch_p - batch), (0, 0)))
    grid = (num_tiles,)

    def const_spec(arr):
        # Full-array block, constant index map -> stays VMEM-resident across
        # grid steps (no re-fetch between consecutive identical block indices).
        return pl.BlockSpec(arr.shape, lambda i: (0, 0))

    out = pl.pallas_call(
        _decoder_kernel,
        out_shape=jax.ShapeDtypeStruct((batch_p, output_dim), out_dtype),
        grid=grid,
        in_specs=[
            pl.BlockSpec((tb, latent_dim), lambda i: (i, 0)),   # x: batch-tiled
            const_spec(prep["w0"]), const_spec(prep["b0"]),
            const_spec(prep["w1"]), const_spec(prep["b1"]),
            const_spec(prep["w2"]), const_spec(prep["b2"]),
        ],
        # Output at its true width: block last dim == full array dim (no lane
        # padding, no post-call lane slice).
        out_specs=pl.BlockSpec((tb, output_dim), lambda i: (i, 0)),
        compiler_params=pltpu.CompilerParams(
            dimension_semantics=("parallel",),   # shard batch tiles on v7x's 2 TCs
        ),
    )(x, prep["w0"], prep["b0"], prep["w1"], prep["b1"], prep["w2"], prep["b2"])

    # Drop batch padding only (no lane padding on the output any more).
    if batch_p != batch:
        out = out[:batch]
    return out


# ---------------------------------------------------------------------------
# Synthetic init + pure-JAX reference (sanity check)
# ---------------------------------------------------------------------------
def init_params(key, latent_dim, hidden_dim, output_dim):
    """Linear weights/biases ~ U(-1/sqrt(fan_in), +) (PyTorch default), stored
    as (in, out); BatchNorm1d gamma=1, beta=0, running mean=0, var=1."""
    dims = [latent_dim] + list(hidden_dim) + [output_dim]
    params = {}
    keys = jax.random.split(key, 2 * (len(dims) - 1))
    for i in range(len(dims) - 1):
        fan_in, fan_out = dims[i], dims[i + 1]
        bound = 1.0 / jnp.sqrt(fan_in)
        params[f"w{i}"] = jax.random.uniform(
            keys[2 * i], (fan_in, fan_out), jnp.float32, -bound, bound)
        params[f"b{i}"] = jax.random.uniform(
            keys[2 * i + 1], (fan_out,), jnp.float32, -bound, bound)
    for i, h in enumerate(hidden_dim):
        params[f"g{i}"] = jnp.ones((h,), jnp.float32)
        params[f"be{i}"] = jnp.zeros((h,), jnp.float32)
        params[f"rm{i}"] = jnp.zeros((h,), jnp.float32)
        params[f"rv{i}"] = jnp.ones((h,), jnp.float32)
    return params


def reference_forward(x, params):
    def fc(h, w, b, g, be, rm, rv):
        h = h @ w + b
        h = (h - rm) / jnp.sqrt(rv + BN_EPS) * g + be
        return jnp.where(h >= 0, h, LEAKY_SLOPE * h)

    h = fc(x, params["w0"], params["b0"], params["g0"], params["be0"],
           params["rm0"], params["rv0"])
    h = fc(h, params["w1"], params["b1"], params["g1"], params["be1"],
           params["rm1"], params["rv1"])
    logits = h @ params["w2"] + params["b2"]
    return jax.nn.sigmoid(logits)


if __name__ == "__main__":
    latent_dim = 16
    hidden_dim = [32, 64]
    output_dim = 48
    batch = 8

    key = jax.random.PRNGKey(0)
    kx, kp = jax.random.split(key)
    x = jax.random.normal(kx, (batch, latent_dim), dtype=jnp.float32)
    params = init_params(kp, latent_dim, hidden_dim, output_dim)

    # One-time parameter prep (BN fold + hidden-lane padding) outside the call path.
    prep = prepare_decoder_params(params)

    ref = reference_forward(x, params)

    # f32 output path: exact sigmoid, tight tolerance.
    out = probabilistic_decoder_forward(x, prep)
    out = jax.block_until_ready(out)
    assert out.shape == (batch, output_dim)
    err = float(jnp.max(jnp.abs(out - ref)))
    assert jnp.allclose(out, ref, atol=1e-5, rtol=1e-5), f"f32 max abs err {err}"

    # bf16 output path (halved writeback): only the final store is bf16.
    out_bf16 = probabilistic_decoder_forward(x, prep, out_dtype=jnp.bfloat16)
    out_bf16 = jax.block_until_ready(out_bf16)
    err_bf = float(jnp.max(jnp.abs(out_bf16.astype(jnp.float32) - ref)))
    assert jnp.allclose(out_bf16.astype(jnp.float32), ref, atol=4e-3, rtol=4e-3), \
        f"bf16 max abs err {err_bf}"

    print("KERNEL_OK")
</pallas_src>

<mosaic_0001>
module attributes {stable_mosaic.version = 11 : i64} {
  func.func @_decoder_kernel(%arg0: i32, %arg1: memref<8x16xf32, #tpu.memory_space<vmem>>, %arg2: memref<16x128xf32, #tpu.memory_space<vmem>>, %arg3: memref<1x128xf32, #tpu.memory_space<vmem>>, %arg4: memref<128x128xf32, #tpu.memory_space<vmem>>, %arg5: memref<1x128xf32, #tpu.memory_space<vmem>>, %arg6: memref<128x48xf32, #tpu.memory_space<vmem>>, %arg7: memref<1x48xf32, #tpu.memory_space<vmem>>, %arg8: memref<8x48xf32, #tpu.memory_space<vmem>>) attributes {dimension_semantics = [#tpu.dimension_semantics<parallel>], iteration_bounds = array<i64: 1>, scalar_prefetch = 0 : i64, scratch_operands = 0 : i64, tpu.core_type = #tpu.core_type<tc>, window_params = [{transform_indices = @transform_0, window_bounds = array<i64: 8, 16>}, {pipeline_mode = #tpu.pipeline_mode<synchronous>, transform_indices = @transform_1, window_bounds = array<i64: 16, 128>}, {pipeline_mode = #tpu.pipeline_mode<synchronous>, transform_indices = @transform_2, window_bounds = array<i64: 1, 128>}, {pipeline_mode = #tpu.pipeline_mode<synchronous>, transform_indices = @transform_3, window_bounds = array<i64: 128, 128>}, {pipeline_mode = #tpu.pipeline_mode<synchronous>, transform_indices = @transform_4, window_bounds = array<i64: 1, 128>}, {pipeline_mode = #tpu.pipeline_mode<synchronous>, transform_indices = @transform_5, window_bounds = array<i64: 128, 48>}, {pipeline_mode = #tpu.pipeline_mode<synchronous>, transform_indices = @transform_6, window_bounds = array<i64: 1, 48>}, {transform_indices = @transform_7, window_bounds = array<i64: 8, 48>}]} {
    %c0 = arith.constant 0 : index
    %c0_0 = arith.constant 0 : index
    %0 = vector.load %arg1[%c0, %c0_0] : memref<8x16xf32, #tpu.memory_space<vmem>>, vector<8x16xf32>
    %c0_1 = arith.constant 0 : index
    %c0_2 = arith.constant 0 : index
    %1 = vector.load %arg2[%c0_1, %c0_2] : memref<16x128xf32, #tpu.memory_space<vmem>>, vector<16x128xf32>
    %cst = arith.constant dense<0.000000e+00> : vector<8x128xf32>
    %2 = tpu.matmul %0, %1, %cst {dimension_numbers = #tpu.dot_dimension_numbers<[1], [0], [0], [1], [0, 0, 1, 1], [], []>} : vector<8x16xf32>, vector<16x128xf32>, vector<8x128xf32> -> vector<8x128xf32>
    %c0_3 = arith.constant 0 : index
    %c0_4 = arith.constant 0 : index
    %3 = vector.load %arg3[%c0_3, %c0_4] : memref<1x128xf32, #tpu.memory_space<vmem>>, vector<1x128xf32>
    %4 = vector.broadcast %3 : vector<1x128xf32> to vector<8x128xf32>
    %5 = arith.addf %2, %4 : vector<8x128xf32>
    %cst_5 = arith.constant 2.000000e-01 : f32
    %6 = vector.broadcast %cst_5 : f32 to vector<8x128xf32>
    %7 = arith.mulf %6, %5 : vector<8x128xf32>
    %8 = arith.maximumf %5, %7 : vector<8x128xf32>
    %c0_6 = arith.constant 0 : index
    %c0_7 = arith.constant 0 : index
    %9 = vector.load %arg4[%c0_6, %c0_7] : memref<128x128xf32, #tpu.memory_space<vmem>>, vector<128x128xf32>
    %cst_8 = arith.constant dense<0.000000e+00> : vector<8x128xf32>
    %10 = tpu.matmul %8, %9, %cst_8 {dimension_numbers = #tpu.dot_dimension_numbers<[1], [0], [0], [1], [0, 0, 1, 1], [], []>} : vector<8x128xf32>, vector<128x128xf32>, vector<8x128xf32> -> vector<8x128xf32>
    %c0_9 = arith.constant 0 : index
    %c0_10 = arith.constant 0 : index
    %11 = vector.load %arg5[%c0_9, %c0_10] : memref<1x128xf32, #tpu.memory_space<vmem>>, vector<1x128xf32>
    %12 = vector.broadcast %11 : vector<1x128xf32> to vector<8x128xf32>
    %13 = arith.addf %10, %12 : vector<8x128xf32>
    %cst_11 = arith.constant 2.000000e-01 : f32
    %14 = vector.broadcast %cst_11 : f32 to vector<8x128xf32>
    %15 = arith.mulf %14, %13 : vector<8x128xf32>
    %16 = arith.maximumf %13, %15 : vector<8x128xf32>
    %c0_12 = arith.constant 0 : index
    %c0_13 = arith.constant 0 : index
    %17 = vector.load %arg6[%c0_12, %c0_13] : memref<128x48xf32, #tpu.memory_space<vmem>>, vector<128x48xf32>
    %cst_14 = arith.constant dense<0.000000e+00> : vector<8x48xf32>
    %18 = tpu.matmul %16, %17, %cst_14 {dimension_numbers = #tpu.dot_dimension_numbers<[1], [0], [0], [1], [0, 0, 1, 1], [], []>} : vector<8x128xf32>, vector<128x48xf32>, vector<8x48xf32> -> vector<8x48xf32>
    %c0_15 = arith.constant 0 : index
    %c0_16 = arith.constant 0 : index
    %19 = vector.load %arg7[%c0_15, %c0_16] : memref<1x48xf32, #tpu.memory_space<vmem>>, vector<1x48xf32>
    %20 = vector.broadcast %19 : vector<1x48xf32> to vector<8x48xf32>
    %21 = arith.addf %18, %20 : vector<8x48xf32>
    %cst_17 = arith.constant 0.000000e+00 : f32
    %22 = vector.broadcast %cst_17 : f32 to vector<8x48xf32>
    %23 = arith.cmpf oge, %21, %22 : vector<8x48xf32>
    %cst_18 = arith.constant 0.000000e+00 : f32
    %24 = vector.broadcast %cst_18 : f32 to vector<8x48xf32>
    %25 = arith.subf %24, %21 : vector<8x48xf32>
    %26 = arith.select %23, %25, %21 : vector<8x48xi1>, vector<8x48xf32>
    %27 = math.exp %26 : vector<8x48xf32>
    %cst_19 = arith.constant 1.000000e+00 : f32
    %28 = vector.broadcast %cst_19 : f32 to vector<8x48xf32>
    %29 = arith.addf %28, %27 : vector<8x48xf32>
    %cst_20 = arith.constant 1.000000e+00 : f32
    %30 = vector.broadcast %cst_20 : f32 to vector<8x48xf32>
    %31 = arith.divf %30, %29 : vector<8x48xf32>
    %cst_21 = arith.constant 1.000000e+00 : f32
    %32 = vector.broadcast %cst_21 : f32 to vector<8x48xf32>
    %33 = arith.addf %32, %27 : vector<8x48xf32>
    %34 = arith.divf %27, %33 : vector<8x48xf32>
    %35 = arith.select %23, %31, %34 : vector<8x48xi1>, vector<8x48xf32>
    %c0_22 = arith.constant 0 : index
    %c0_23 = arith.constant 0 : index
    %36 = vector.load %arg8[%c0_22, %c0_23] : memref<8x48xf32, #tpu.memory_space<vmem>>, vector<8x48xf32>
    tpu.vector_store %arg8[%c0_22, %c0_23], %35 {strides = array<i32>} : memref<8x48xf32, #tpu.memory_space<vmem>>, vector<8x48xf32>,
    return
  }
  func.func @transform_0(%arg0: i32) -> (i32, i32) {
    %c0_i32 = arith.constant 0 : i32
    %c0_i32_0 = arith.constant 0 : i32
    return %arg0, %c0_i32 : i32, i32
  }
  func.func @transform_1(%arg0: i32) -> (i32, i32) {
    %c0_i32 = arith.constant 0 : i32
    %c0_i32_0 = arith.constant 0 : i32
    %c0_i32_1 = arith.constant 0 : i32
    return %c0_i32, %c0_i32_0 : i32, i32
  }
  func.func @transform_2(%arg0: i32) -> (i32, i32) {
    %c0_i32 = arith.constant 0 : i32
    %c0_i32_0 = arith.constant 0 : i32
    %c0_i32_1 = arith.constant 0 : i32
    return %c0_i32, %c0_i32_0 : i32, i32
  }
  func.func @transform_3(%arg0: i32) -> (i32, i32) {
    %c0_i32 = arith.constant 0 : i32
    %c0_i32_0 = arith.constant 0 : i32
    %c0_i32_1 = arith.constant 0 : i32
    return %c0_i32, %c0_i32_0 : i32, i32
  }
  func.func @transform_4(%arg0: i32) -> (i32, i32) {
    %c0_i32 = arith.constant 0 : i32
    %c0_i32_0 = arith.constant 0 : i32
    %c0_i32_1 = arith.constant 0 : i32
    return %c0_i32, %c0_i32_0 : i32, i32
  }
  func.func @transform_5(%arg0: i32) -> (i32, i32) {
    %c0_i32 = arith.constant 0 : i32
    %c0_i32_0 = arith.constant 0 : i32
    %c0_i32_1 = arith.constant 0 : i32
    return %c0_i32, %c0_i32_0 : i32, i32
  }
  func.func @transform_6(%arg0: i32) -> (i32, i32) {
    %c0_i32 = arith.constant 0 : i32
    %c0_i32_0 = arith.constant 0 : i32
    %c0_i32_1 = arith.constant 0 : i32
    return %c0_i32, %c0_i32_0 : i32, i32
  }
  func.func @transform_7(%arg0: i32) -> (i32, i32) {
    %c0_i32 = arith.constant 0 : i32
    %c0_i32_0 = arith.constant 0 : i32
    return %arg0, %c0_i32 : i32, i32
  }
}

</mosaic_0001>

<llo_original>
// kernel: tpu_custom_call.1
$region0: #{tpu_custom_call.1}
  #allocation0 [shape = 'u32[]', space=smem, size = 0x4, offset = 0x4, fixed_abs, tag = 'smem constant byte address 0x4 - core index']
  #allocation1 [shape = 'u32[144,128]{1,0:T(1,128)}', space=vmem, size = 0x12000, scoped, tag = 'internal scratch']
  %s0 = inlined_call_operand.vmem [shape: f32[8,16], index: 0, kind: input, shape index: {}]
  %s1 = inlined_call_operand.vmem [shape: f32[16,128], index: 1, kind: input, shape index: {}]
  %s2 = inlined_call_operand.vmem [shape: f32[1,128], index: 2, kind: input, shape index: {}]
  %s3 = inlined_call_operand.vmem [shape: f32[128,128], index: 3, kind: input, shape index: {}]
  %s4 = inlined_call_operand.vmem [shape: f32[1,128], index: 4, kind: input, shape index: {}]
  %s5 = inlined_call_operand.vmem [shape: f32[128,48], index: 5, kind: input, shape index: {}]
  %s6 = inlined_call_operand.vmem [shape: f32[1,48], index: 6, kind: input, shape index: {}]
  %s7 = inlined_call_operand.hbm [shape: f32[8,48], index: 7, kind: output, shape index: {}]
  %s8 = sld [smem:[#allocation0]]
  $region38: #{tpu_custom_call.1} parent=0
    _
  %s10 = ssub.s32 1, %s8
  %s11 = scalar_select 0, %s10, %s8
  $region1: #{tpu_custom_call.1} parent=0
    #allocation2 [shape = 'u8[4096]{0}', space=vmem, size = 0x1000, scoped, tag = 'output window, operand 0, single buffered']
    #allocation3 [shape = 's32[1]{0}', space=sflag, size = 0x4, scoped, tag = 'scoped memory for tpu_custom_call.1']
    %12 = vsyncpa [#allocation3], 0
    // Predicated region
    $region2: #{tpu_custom_call.1} parent=1 // pred_check
      _
    $region3: #{tpu_custom_call.1} parent=1 // pred_check_branch
      %14 = sbr.rel (0) target = $region5
    $region4: #{tpu_custom_call.1} parent=1 // pred_region
      _
    $region5: #{tpu_custom_call.1} parent=1 // pred_fallthru
      _
    // Predicated region
    $region6: #{tpu_custom_call.1} parent=1 // pred_check
      _
    $region7: #{tpu_custom_call.1} parent=1 // pred_check_branch
      %16 = sbr.rel (0) target = $region9
    $region8: #{tpu_custom_call.1} parent=1 // pred_region
      _
    $region9: #{tpu_custom_call.1} parent=1 // pred_fallthru
      _
    // Predicated region
    $region10: #{tpu_custom_call.1} parent=1 // pred_check
      _
    $region11: #{tpu_custom_call.1} parent=1 // pred_check_branch
      %18 = sbr.rel (0) target = $region13
    $region12: #{tpu_custom_call.1} parent=1 // pred_region
      _
    $region13: #{tpu_custom_call.1} parent=1 // pred_fallthru
      _
    // Predicated region
    $region14: #{tpu_custom_call.1} parent=1 // pred_check
      _
    $region15: #{tpu_custom_call.1} parent=1 // pred_check_branch
      %20 = sbr.rel (0) target = $region17
    $region16: #{tpu_custom_call.1} parent=1 // pred_region
      _
    $region17: #{tpu_custom_call.1} parent=1 // pred_fallthru
      _
    // Predicated region
    $region18: #{tpu_custom_call.1} parent=1 // pred_check
      _
    $region19: #{tpu_custom_call.1} parent=1 // pred_check_branch
      %22 = sbr.rel (0) target = $region21
    $region20: #{tpu_custom_call.1} parent=1 // pred_region
      _
    $region21: #{tpu_custom_call.1} parent=1 // pred_fallthru
      _
    // Predicated region
    $region22: #{tpu_custom_call.1} parent=1 // pred_check
      _
    $region23: #{tpu_custom_call.1} parent=1 // pred_check_branch
      %24 = sbr.rel (0) target = $region25
    $region24: #{tpu_custom_call.1} parent=1 // pred_region
      _
    $region25: #{tpu_custom_call.1} parent=1 // pred_fallthru
      _
    // Predicated region
    $region26: #{tpu_custom_call.1} parent=1 // pred_check
      _
    $region27: #{tpu_custom_call.1} parent=1 // pred_check_branch
      %26 = sbr.rel (0) target = $region29
    $region28: #{tpu_custom_call.1} parent=1 // pred_region
      _
    $region29: #{tpu_custom_call.1} parent=1 // pred_fallthru
      _
    %v27 = vld [vmem:[%s0] sm:$0xff]
    %v28 = vld [vmem:[%s1] sm:$0xff]
    %v29 = vld [vmem:[%s1 + $0x8] sm:$0xff]
    %v30 = vld [vmem:[%s2] sm:$0x1]
    %v32 = vlaneseq
    %v33 = vshrl.u32 %v32, 7
    %v34 = vsub.s32 0, %v33
    %v35 = vrot.slane %v30, %v34
    %vm37 = vcmask 130048
    %v39 = vsel %vm37, %v27, 0
    %41 = vmatprep.subr.mxu0 0.0
    %42 = vmatpush1.msra.mxu0 0.0
    %43 = vmatprep.subr.mxu0 0.0
    %44 = vmatpush1.msra.mxu0 0.0
    %45 = vmatprep.subr.mxu0 0.0
    %46 = vmatpush1.msra.mxu0 0.0
    %47 = vmatprep.subr.mxu0 0.0
    %48 = vmatpush1.msra.mxu0 0.0
    %49 = vmatprep.subr.mxu0 0.0
    %50 = vmatpush1.msra.mxu0 0.0
    %51 = vmatprep.subr.mxu0 0.0
    %52 = vmatpush1.msra.mxu0 0.0
    %53 = vmatprep.subr.mxu0 0.0
    %54 = vmatpush1.msra.mxu0 0.0
    %55 = vmatprep.subr.mxu0 0.0
    %56 = vmatpush1.msra.mxu0 0.0
    %57 = vmatprep.subr.mxu0 0.0
    %58 = vmatpush1.msra.mxu0 0.0
    %59 = vmatprep.subr.mxu0 0.0
    %60 = vmatpush1.msra.mxu0 0.0
    %61 = vmatprep.subr.mxu0 0.0
    %62 = vmatpush1.msra.mxu0 0.0
    %63 = vmatprep.subr.mxu0 0.0
    %64 = vmatpush1.msra.mxu0 0.0
    %65 = vmatprep.subr.mxu0 0.0
    %66 = vmatpush1.msra.mxu0 0.0
    %67 = vmatprep.subr.mxu0 0.0
    %68 = vmatpush1.msra.mxu0 0.0
    %69 = vmatprep.subr.mxu0 0.0
    %70 = vmatpush1.msra.mxu0 %v29
    %71 = vmatprep.subr.mxu0 0.0
    %72 = vmatpush1.msra.mxu0 %v28
    %73 = vmatprep.subr.mxu0 0.0
    %74 = vmatpush2.msra.mxu0 0.0
    %75 = vmatprep.subr.mxu0 0.0
    %76 = vmatpush2.msra.mxu0 0.0
    %77 = vmatprep.subr.mxu0 0.0
    %78 = vmatpush2.msra.mxu0 0.0
    %79 = vmatprep.subr.mxu0 0.0
    %80 = vmatpush2.msra.mxu0 0.0
    %81 = vmatprep.subr.mxu0 0.0
    %82 = vmatpush2.msra.mxu0 0.0
    %83 = vmatprep.subr.mxu0 0.0
    %84 = vmatpush2.msra.mxu0 0.0
    %85 = vmatprep.subr.mxu0 0.0
    %86 = vmatpush2.msra.mxu0 0.0
    %87 = vmatprep.subr.mxu0 0.0
    %88 = vmatpush2.msra.mxu0 0.0
    %89 = vmatprep.subr.mxu0 0.0
    %90 = vmatpush2.msra.mxu0 0.0
    %91 = vmatprep.subr.mxu0 0.0
    %92 = vmatpush2.msra.mxu0 0.0
    %93 = vmatprep.subr.mxu0 0.0
    %94 = vmatpush2.msra.mxu0 0.0
    %95 = vmatprep.subr.mxu0 0.0
    %96 = vmatpush2.msra.mxu0 0.0
    %97 = vmatprep.subr.mxu0 0.0
    %98 = vmatpush2.msra.mxu0 0.0
    %99 = vmatprep.subr.mxu0 0.0
    %100 = vmatpush2.msra.mxu0 0.0
    %101 = vmatprep.subr.mxu0 0.0
    %102 = vmatpush2.msra.mxu0 0.0
    %103 = vmatprep.subr.mxu0 0.0
    %104 = vmatpush2.msra.mxu0 0.0
    %105 = vmatprep.mubr.f32.mxu0 0.0
    %106 = vmatmul.mubr.f32.gmra.mxu0 %v39
    %v107 = vpop.f32.mrf.mxu0
    %v108 = vadd.f32 %v35, %v107
    %v109 = vpop.f32.mrf.mxu0
    %110 = vdwg.mxu0
    %v111 = vmul.f32 %v108, 0.2
    %v112 = vmax.f32 %v108, %v111
    %v113 = vld [vmem:[%s3] sm:$0xff]
    %v114 = vld [vmem:[%s3 + $0x8] sm:$0xff]
    %v115 = vld [vmem:[%s3 + $0x10] sm:$0xff]
    %v116 = vld [vmem:[%s3 + $0x18] sm:$0xff]
    %v117 = vld [vmem:[%s3 + $0x20] sm:$0xff]
    %v118 = vld [vmem:[%s3 + $0x28] sm:$0xff]
    %v119 = vld [vmem:[%s3 + $0x30] sm:$0xff]
    %v120 = vld [vmem:[%s3 + $0x38] sm:$0xff]
    %v121 = vld [vmem:[%s3 + $0x40] sm:$0xff]
    %v122 = vld [vmem:[%s3 + $0x48] sm:$0xff]
    %v123 = vld [vmem:[%s3 + $0x50] sm:$0xff]
    %v124 = vld [vmem:[%s3 + $0x58] sm:$0xff]
    %v125 = vld [vmem:[%s3 + $0x60] sm:$0xff]
    %v126 = vld [vmem:[%s3 + $0x68] sm:$0xff]
    %v127 = vld [vmem:[%s3 + $0x70] sm:$0xff]
    %v128 = vld [vmem:[%s3 + $0x78] sm:$0xff]
    %v129 = vld [vmem:[%s4] sm:$0x1]
    %v131 = vlaneseq
    %v132 = vshrl.u32 %v131, 7
    %v133 = vsub.s32 0, %v132
    %v134 = vrot.slane %v129, %v133
    %136 = vmatprep.subr.mxu0 0.0
    %137 = vmatpush1.msra.mxu0 %v128
    %138 = vmatprep.subr.mxu0 0.0
    %139 = vmatpush1.msra.mxu0 %v127
    %140 = vmatprep.subr.mxu0 0.0
    %141 = vmatpush1.msra.mxu0 %v126
    %142 = vmatprep.subr.mxu0 0.0
    %143 = vmatpush1.msra.mxu0 %v125
    %144 = vmatprep.subr.mxu0 0.0
    %145 = vmatpush1.msra.mxu0 %v124
    %146 = vmatprep.subr.mxu0 0.0
    %147 = vmatpush1.msra.mxu0 %v123
    %148 = vmatprep.subr.mxu0 0.0
    %149 = vmatpush1.msra.mxu0 %v122
    %150 = vmatprep.subr.mxu0 0.0
    %151 = vmatpush1.msra.mxu0 %v121
    %152 = vmatprep.subr.mxu0 0.0
    %153 = vmatpush1.msra.mxu0 %v120
    %154 = vmatprep.subr.mxu0 0.0
    %155 = vmatpush1.msra.mxu0 %v119
    %156 = vmatprep.subr.mxu0 0.0
    %157 = vmatpush1.msra.mxu0 %v118
    %158 = vmatprep.subr.mxu0 0.0
    %159 = vmatpush1.msra.mxu0 %v117
    %160 = vmatprep.subr.mxu0 0.0
    %161 = vmatpush1.msra.mxu0 %v116
    %162 = vmatprep.subr.mxu0 0.0
    %163 = vmatpush1.msra.mxu0 %v115
    %164 = vmatprep.subr.mxu0 0.0
    %165 = vmatpush1.msra.mxu0 %v114
    %166 = vmatprep.subr.mxu0 0.0
    %167 = vmatpush1.msra.mxu0 %v113
    %168 = vmatprep.subr.mxu0 0.0
    %169 = vmatpush2.msra.mxu0 0.0
    %170 = vmatprep.subr.mxu0 0.0
    %171 = vmatpush2.msra.mxu0 0.0
    %172 = vmatprep.subr.mxu0 0.0
    %173 = vmatpush2.msra.mxu0 0.0
    %174 = vmatprep.subr.mxu0 0.0
    %175 = vmatpush2.msra.mxu0 0.0
    %176 = vmatprep.subr.mxu0 0.0
    %177 = vmatpush2.msra.mxu0 0.0
    %178 = vmatprep.subr.mxu0 0.0
    %179 = vmatpush2.msra.mxu0 0.0
    %180 = vmatprep.subr.mxu0 0.0
    %181 = vmatpush2.msra.mxu0 0.0
    %182 = vmatprep.subr.mxu0 0.0
    %183 = vmatpush2.msra.mxu0 0.0
    %184 = vmatprep.subr.mxu0 0.0
    %185 = vmatpush2.msra.mxu0 0.0
    %186 = vmatprep.subr.mxu0 0.0
    %187 = vmatpush2.msra.mxu0 0.0
    %188 = vmatprep.subr.mxu0 0.0
    %189 = vmatpush2.msra.mxu0 0.0
    %190 = vmatprep.subr.mxu0 0.0
    %191 = vmatpush2.msra.mxu0 0.0
    %192 = vmatprep.subr.mxu0 0.0
    %193 = vmatpush2.msra.mxu0 0.0
    %194 = vmatprep.subr.mxu0 0.0
    %195 = vmatpush2.msra.mxu0 0.0
    %196 = vmatprep.subr.mxu0 0.0
    %197 = vmatpush2.msra.mxu0 0.0
    %198 = vmatprep.subr.mxu0 0.0
    %199 = vmatpush2.msra.mxu0 0.0
    %200 = vmatprep.mubr.f32.mxu0 0.0
    %201 = vmatmul.mubr.f32.gmra.mxu0 %v112
    %v202 = vpop.f32.mrf.mxu0
    %v203 = vadd.f32 %v134, %v202
    %v204 = vpop.f32.mrf.mxu0
    %205 = vdwg.mxu0
    %v206 = vmul.f32 %v203, 0.2
    %v207 = vmax.f32 %v203, %v206
    %v208 = vld [vmem:[%s5] sm:$0xff]
    %v209 = vld [vmem:[%s5 + $0x8] sm:$0xff]
    %v210 = vld [vmem:[%s5 + $0x10] sm:$0xff]
    %v211 = vld [vmem:[%s5 + $0x18] sm:$0xff]
    %v212 = vld [vmem:[%s5 + $0x20] sm:$0xff]
    %v213 = vld [vmem:[%s5 + $0x28] sm:$0xff]
    %v214 = vld [vmem:[%s5 + $0x30] sm:$0xff]
    %v215 = vld [vmem:[%s5 + $0x38] sm:$0xff]
    %v216 = vld [vmem:[%s5 + $0x40] sm:$0xff]
    %v217 = vld [vmem:[%s5 + $0x48] sm:$0xff]
    %v218 = vld [vmem:[%s5 + $0x50] sm:$0xff]
    %v219 = vld [vmem:[%s5 + $0x58] sm:$0xff]
    %v220 = vld [vmem:[%s5 + $0x60] sm:$0xff]
    %v221 = vld [vmem:[%s5 + $0x68] sm:$0xff]
    %v222 = vld [vmem:[%s5 + $0x70] sm:$0xff]
    %v223 = vld [vmem:[%s5 + $0x78] sm:$0xff]
    %v224 = vld [vmem:[%s6] sm:$0x1]
    %v226 = vlaneseq
    %v227 = vshrl.u32 %v226, 7
    %v228 = vsub.s32 0, %v227
    %v229 = vrot.slane %v224, %v228
    %231 = vmatprep.subr.mxu0 0.0
    %232 = vmatpush1.msra.mxu0 %v223
    %233 = vmatprep.subr.mxu0 0.0
    %234 = vmatpush1.msra.mxu0 %v222
    %235 = vmatprep.subr.mxu0 0.0
    %236 = vmatpush1.msra.mxu0 %v221
    %237 = vmatprep.subr.mxu0 0.0
    %238 = vmatpush1.msra.mxu0 %v220
    %239 = vmatprep.subr.mxu0 0.0
    %240 = vmatpush1.msra.mxu0 %v219
    %241 = vmatprep.subr.mxu0 0.0
    %242 = vmatpush1.msra.mxu0 %v218
    %243 = vmatprep.subr.mxu0 0.0
    %244 = vmatpush1.msra.mxu0 %v217
    %245 = vmatprep.subr.mxu0 0.0
    %246 = vmatpush1.msra.mxu0 %v216
    %247 = vmatprep.subr.mxu0 0.0
    %248 = vmatpush1.msra.mxu0 %v215
    %249 = vmatprep.subr.mxu0 0.0
    %250 = vmatpush1.msra.mxu0 %v214
    %251 = vmatprep.subr.mxu0 0.0
    %252 = vmatpush1.msra.mxu0 %v213
    %253 = vmatprep.subr.mxu0 0.0
    %254 = vmatpush1.msra.mxu0 %v212
    %255 = vmatprep.subr.mxu0 0.0
    %256 = vmatpush1.msra.mxu0 %v211
    %257 = vmatprep.subr.mxu0 0.0
    %258 = vmatpush1.msra.mxu0 %v210
    %259 = vmatprep.subr.mxu0 0.0
    %260 = vmatpush1.msra.mxu0 %v209
    %261 = vmatprep.subr.mxu0 0.0
    %262 = vmatpush1.msra.mxu0 %v208
    %263 = vmatprep.subr.mxu0 0.0
    %264 = vmatpush2.msra.mxu0 0.0
    %265 = vmatprep.subr.mxu0 0.0
    %266 = vmatpush2.msra.mxu0 0.0
    %267 = vmatprep.subr.mxu0 0.0
    %268 = vmatpush2.msra.mxu0 0.0
    %269 = vmatprep.subr.mxu0 0.0
    %270 = vmatpush2.msra.mxu0 0.0
    %271 = vmatprep.subr.mxu0 0.0
    %272 = vmatpush2.msra.mxu0 0.0
    %273 = vmatprep.subr.mxu0 0.0
    %274 = vmatpush2.msra.mxu0 0.0
    %275 = vmatprep.subr.mxu0 0.0
    %276 = vmatpush2.msra.mxu0 0.0
    %277 = vmatprep.subr.mxu0 0.0
    %278 = vmatpush2.msra.mxu0 0.0
    %279 = vmatprep.subr.mxu0 0.0
    %280 = vmatpush2.msra.mxu0 0.0
    %281 = vmatprep.subr.mxu0 0.0
    %282 = vmatpush2.msra.mxu0 0.0
    %283 = vmatprep.subr.mxu0 0.0
    %284 = vmatpush2.msra.mxu0 0.0
    %285 = vmatprep.subr.mxu0 0.0
    %286 = vmatpush2.msra.mxu0 0.0
    %287 = vmatprep.subr.mxu0 0.0
    %288 = vmatpush2.msra.mxu0 0.0
    %289 = vmatprep.subr.mxu0 0.0
    %290 = vmatpush2.msra.mxu0 0.0
    %291 = vmatprep.subr.mxu0 0.0
    %292 = vmatpush2.msra.mxu0 0.0
    %293 = vmatprep.subr.mxu0 0.0
    %294 = vmatpush2.msra.mxu0 0.0
    %295 = vmatprep.mubr.f32.mxu0 0.0
    %296 = vmatmul.mubr.f32.gmra.mxu0 %v207
    %v297 = vpop.f32.mrf.mxu0
    %v298 = vadd.f32 %v229, %v297
    %v299 = vpop.f32.mrf.mxu0
    %300 = vdwg.mxu0
    %vm301 = vcmp.ge.f32.partialorder %v298, 0.0
    %v302 = vsub.f32 0.0, %v298
    %v303 = vsel %vm301, %v302, %v298
    %v304 = vmul.f32 %v303, 1.442695
    %v305 = vpow.pop %v304
    %v306 = vadd.f32 %v305, 1.0
    %v307 = vrcp.pop %v306
    %v308 = vmul.f32 1.0, %v307
    %v309 = vmul.f32 %v305, %v307
    %v310 = vsel %vm301, %v308, %v309
    %vm311 = vcmask 392192
    %312 = vst.msk [vmem:[#allocation2] sm:$0xff] %vm311, %v310
    // Predicated region
    $region30: #{tpu_custom_call.1} parent=1 // pred_check
      _
    $region31: #{tpu_custom_call.1} parent=1 // pred_check_branch
      %314 = sbr.rel (0) target = $region33
    $region32: #{tpu_custom_call.1} parent=1 // pred_region
      %s316 = ssub.s32 128, 128
      %317 = vsyncadd [#allocation3], %s316
      %s319 = sshll.u32 [#allocation2], 4
      %s320 = int_to_ptr.vmem [resolvable:$true] %s319
      %322 = dma.vmem_to_hbm [thread:$0]  %s320, 128, %s7, [#allocation3]
    $region33: #{tpu_custom_call.1} parent=1 // pred_fallthru
      _
    // Predicated region
    $region34: #{tpu_custom_call.1} parent=1 // pred_check
      _
    $region35: #{tpu_custom_call.1} parent=1 // pred_check_branch
      %324 = sbr.rel (0) target = $region37
    $region36: #{tpu_custom_call.1} parent=1 // pred_region
      %325 = dma.done [#allocation3], 128
    $region37: #{tpu_custom_call.1} parent=1 // pred_fallthru
      _
    %326 = vsyncpa [#allocation3], 1

</llo_original>
